<compile_context>
chip_gen: v5e
topology: v5e:2x2
jax: 0.10.0
libtpu: 0.0.40
codegen_flags: <defaults>
</compile_context>

<pallas_src>
import jax
import jax.numpy as jnp
from jax.experimental import pallas as pl
from jax.experimental.pallas import tpu as pltpu


def _query_learned_kernel(w_ref, o_ref):
    # w_ref: (1, L*E) lane-dense weight (same resident block every grid step)
    # o_ref: (Bt, L*E) lane-dense output block for the current batch chunk
    o_ref[...] = jnp.broadcast_to(w_ref[...], o_ref.shape)


def _round_up(n, m):
    return ((n + m - 1) // m) * m


def query_learned_forward(x, weight, *, vmem_block_bytes=4 * 1024 * 1024):
    """Pallas equivalent of QueryLearned.forward.

    x:      (B, S, D)  -- only the batch dim is used
    weight: (L, E)     -- learned query embedding
    returns (B, L, E)
    """
    batch = x.shape[0]
    L, E = weight.shape
    LE = L * E
    itemsize = jnp.dtype(weight.dtype).itemsize

    # Lane-dense flat views (pure metadata reshapes for contiguous row-major).
    w_flat = weight.reshape(1, LE)

    # Rows (batch indices) per grid step, sized against a conservative VMEM
    # budget (double-buffered output block must stay well under v7x's scoped
    # VMEM limit; v5e/v6e have far more headroom).
    rows_budget = max(1, vmem_block_bytes // (LE * itemsize))
    if rows_budget >= batch:
        if batch >= 16:
            # Split into >=2 blocks so v7x's two TensorCores can share the work.
            bt = _round_up(-(-batch // 2), 8)
        else:
            bt = batch  # single block; block dim == full array dim is legal
    else:
        bt = min(max(8, (rows_budget // 8) * 8), batch)

    grid = (pl.cdiv(batch, bt),)

    out_flat = pl.pallas_call(
        _query_learned_kernel,
        out_shape=jax.ShapeDtypeStruct((batch, LE), weight.dtype),
        grid_spec=pl.GridSpec(
            grid=grid,
            in_specs=[
                # Same block every step -> weight stays resident in VMEM.
                pl.BlockSpec((1, LE), lambda b: (0, 0)),
            ],
            out_specs=pl.BlockSpec((bt, LE), lambda b: (b, 0)),
        ),
        compiler_params=pltpu.CompilerParams(
            dimension_semantics=("parallel",),
        ),
        cost_estimate=pl.CostEstimate(
            flops=0,
            transcendentals=0,
            bytes_accessed=(batch * LE + LE) * itemsize,
        ),
    )(w_flat)

    return out_flat.reshape(batch, L, E)


class QueryLearnedPallas:
    """Mirror of the PyTorch module; deterministic init (normal_(weight))."""

    def __init__(self, feature_size, embed_dim, key):
        self.feature_size = feature_size
        self.embed_dim = embed_dim
        L = feature_size[0] * feature_size[1]
        # nn.init.normal_(self.weight): standard normal, deterministic via key.
        self.weight = jax.random.normal(key, (L, embed_dim), dtype=jnp.float32)

    def __call__(self, x):
        return query_learned_forward(x, self.weight)


if __name__ == "__main__":
    key = jax.random.PRNGKey(0)
    k_w, k_x = jax.random.split(key)

    feature_size = (4, 4)   # L = 16
    embed_dim = 32          # L*E = 512 -> lane-dense (multiple of 128)
    batch = 2
    seq = 8

    module = QueryLearnedPallas(feature_size, embed_dim, k_w)

    # x content is irrelevant to the output; only the batch dim matters.
    x = jax.random.normal(k_x, (batch, seq, embed_dim), dtype=jnp.float32)

    out = module(x)
    jax.block_until_ready(out)

    # Reference: torch.stack([weight]*B, dim=0) == broadcast of weight.
    L = feature_size[0] * feature_size[1]
    ref = jnp.broadcast_to(module.weight[None, :, :], (batch, L, embed_dim))
    assert out.shape == (batch, L, embed_dim)
    assert out.dtype == module.weight.dtype
    assert jnp.array_equal(out, ref)

    print("KERNEL_OK")
</pallas_src>

<mosaic_0001>
module attributes {stable_mosaic.version = 11 : i64} {
  func.func @_query_learned_kernel(%arg0: i32, %arg1: memref<1x512xf32, #tpu.memory_space<vmem>>, %arg2: memref<2x512xf32, #tpu.memory_space<vmem>>) attributes {dimension_semantics = [#tpu.dimension_semantics<parallel>], iteration_bounds = array<i64: 1>, scalar_prefetch = 0 : i64, scratch_operands = 0 : i64, tpu.core_type = #tpu.core_type<tc>, window_params = [{pipeline_mode = #tpu.pipeline_mode<synchronous>, transform_indices = @transform_0, window_bounds = array<i64: 1, 512>}, {transform_indices = @transform_1, window_bounds = array<i64: 2, 512>}]} {
    %c0 = arith.constant 0 : index
    %c0_0 = arith.constant 0 : index
    %0 = vector.load %arg1[%c0, %c0_0] : memref<1x512xf32, #tpu.memory_space<vmem>>, vector<1x512xf32>
    %1 = vector.shape_cast %0 : vector<1x512xf32> to vector<1x512xf32>
    %2 = vector.broadcast %1 : vector<1x512xf32> to vector<2x512xf32>
    %c0_1 = arith.constant 0 : index
    %c0_2 = arith.constant 0 : index
    %3 = vector.load %arg2[%c0_1, %c0_2] : memref<2x512xf32, #tpu.memory_space<vmem>>, vector<2x512xf32>
    tpu.vector_store %arg2[%c0_1, %c0_2], %2 {strides = array<i32>} : memref<2x512xf32, #tpu.memory_space<vmem>>, vector<2x512xf32>,
    return
  }
  func.func @transform_0(%arg0: i32) -> (i32, i32) {
    %c0_i32 = arith.constant 0 : i32
    %c0_i32_0 = arith.constant 0 : i32
    %c0_i32_1 = arith.constant 0 : i32
    return %c0_i32, %c0_i32_0 : i32, i32
  }
  func.func @transform_1(%arg0: i32) -> (i32, i32) {
    %c0_i32 = arith.constant 0 : i32
    %c0_i32_0 = arith.constant 0 : i32
    return %arg0, %c0_i32 : i32, i32
  }
}

</mosaic_0001>

<llo_original>
// kernel: tpu_custom_call.1
$region0: #{tpu_custom_call.1}
  #allocation0 [shape = 'u32[]', space=smem, size = 0x4, offset = 0x4, fixed_abs, tag = 'smem constant byte address 0x4 - core index']
  #allocation1 [shape = 'u32[72,128]{1,0:T(1,128)}', space=vmem, size = 0x9000, scoped, tag = 'internal scratch']
  %s0 = inlined_call_operand.hbm [shape: f32[1,512], index: 0, kind: input, shape index: {}]
  %s1 = inlined_call_operand.hbm [shape: f32[2,512], index: 1, kind: output, shape index: {}]
  %s2 = sld [smem:[#allocation0]]
  $region18: #{tpu_custom_call.1} parent=0
    _
  %s4 = ssub.s32 1, %s2
  %s5 = scalar_select 0, %s4, %s2
  $region1: #{tpu_custom_call.1} parent=0
    #allocation2 [shape = 'u8[2048]{0}', space=vmem, size = 0x800, scoped, tag = 'input window, operand 0, single buffered']
    #allocation3 [shape = 's32[1]{0}', space=sflag, size = 0x4, scoped, tag = 'scoped memory for tpu_custom_call.1']
    #allocation4 [shape = 's32[1]{0}', space=sflag, size = 0x4, scoped, tag = 'scoped memory for tpu_custom_call.1']
    #allocation5 [shape = 'u8[4096]{0}', space=vmem, size = 0x1000, scoped, tag = 'output window, operand 0, single buffered']
    %6 = vsyncpa [#allocation3], 0
    %7 = vsyncpa [#allocation4], 0
    // Predicated region
    $region2: #{tpu_custom_call.1} parent=1 // pred_check
      _
    $region3: #{tpu_custom_call.1} parent=1 // pred_check_branch
      %9 = sbr.rel (0) target = $region5
    $region4: #{tpu_custom_call.1} parent=1 // pred_region
      %11 = vsyncadd [#allocation3], 0
      %s13 = sshll.u32 %s0, 4
      %s14 = int_to_ptr.hbm [resolvable:$true] %s13
      %s15 = sshll.u32 [#allocation2], 4
      %s16 = int_to_ptr.vmem [resolvable:$true] %s15
      %18 = dma.hbm_to_vmem [thread:$0]  %s14, 64, %s16, [#allocation3]
    $region5: #{tpu_custom_call.1} parent=1 // pred_fallthru
      _
    // Predicated region
    $region6: #{tpu_custom_call.1} parent=1 // pred_check
      _
    $region7: #{tpu_custom_call.1} parent=1 // pred_check_branch
      %20 = sbr.rel (0) target = $region9
    $region8: #{tpu_custom_call.1} parent=1 // pred_region
      %22 = dma.done [#allocation3], 64
    $region9: #{tpu_custom_call.1} parent=1 // pred_fallthru
      _
    %v23 = vld [vmem:[#allocation2] sm:$0xf]
    %v25 = vperm.slane %v23, 0
    %v26 = vperm.slane %v23, 1
    %v27 = vperm.slane %v23, 2
    %v28 = vperm.slane %v23, 3
    %v29 = vrot.slane %v26, 6
    %v30 = vrot.slane %v27, 4
    %v31 = vrot.slane %v28, 2
    %vm32 = vcmask 1041408
    %v33 = vsel %vm32, %v25, %v29
    %vm34 = vcmask 1045508
    %v35 = vsel %vm34, %v30, %v31
    %vm36 = vcmask 1043456
    %v37 = vsel %vm36, %v33, %v35
    %39 = vst [vmem:[#allocation5] sm:$0xff] %v37
    // Predicated region
    $region10: #{tpu_custom_call.1} parent=1 // pred_check
      _
    $region11: #{tpu_custom_call.1} parent=1 // pred_check_branch
      %41 = sbr.rel (0) target = $region13
    $region12: #{tpu_custom_call.1} parent=1 // pred_region
      %43 = vsyncadd [#allocation4], 0
      %s45 = sshll.u32 [#allocation5], 4
      %s46 = int_to_ptr.vmem [resolvable:$true] %s45
      %s47 = sshll.u32 %s1, 4
      %s48 = int_to_ptr.hbm [resolvable:$true] %s47
      %50 = dma.vmem_to_hbm [thread:$0]  %s46, 128, %s48, [#allocation4]
    $region13: #{tpu_custom_call.1} parent=1 // pred_fallthru
      _
    // Predicated region
    $region14: #{tpu_custom_call.1} parent=1 // pred_check
      _
    $region15: #{tpu_custom_call.1} parent=1 // pred_check_branch
      %52 = sbr.rel (0) target = $region17
    $region16: #{tpu_custom_call.1} parent=1 // pred_region
      %54 = dma.done [#allocation4], 128
    $region17: #{tpu_custom_call.1} parent=1 // pred_fallthru
      _
    %55 = vsyncpa [#allocation3], 1
    %56 = vsyncpa [#allocation4], 1

</llo_original>
